<compile_context>
chip_gen: v7x
topology: tpu7x:2x2x1
jax: 0.10.0
libtpu: 0.0.40
codegen_flags: <defaults>
</compile_context>

<pallas_src>
import functools

import jax
import jax.numpy as jnp
from jax import lax
from jax.experimental import pallas as pl
from jax.experimental.pallas import tpu as pltpu

_LANES = 128
_VMEM_LIMIT_BYTES = 32 * 1024 * 1024   # safe on v5e / v6e / v7x


# --------------------------------------------------------------------------
# Kernels
# --------------------------------------------------------------------------
def _pass1_kernel(timer_ref, max_inf_ref, shape_ref, rate_ref, shift_ref,
                  gamma_norm_ref, infection_time_ref, is_infected_ref, gid_ref,
                  transmission_out, partial_out, *, num_groups):
    """TransmissionUpdater + per-tile partial group sums (InfectionNetworks 1/2)."""
    now = timer_ref[0]

    # ---- TransmissionUpdater (pure VPU/EUP on sublane-dense (TR, 128) tiles) ----
    t_shift = (now - infection_time_ref[...]) - shift_ref[...]
    rate = rate_ref[...]
    base = t_shift * rate
    valid = base > 0.0                          # folds the old (sign(t)+1)/2 mask
    safe_base = jnp.where(valid, base, 1.0)
    # gamma pdf kernel: norm * base^(k-1) * exp(-base) * rate, pow and exp fused
    # into a single exp((k-1)*log(base) - base); safe_base keeps Inf off the EUP.
    aux = gamma_norm_ref[...] * jnp.exp(
        (shape_ref[...] - 1.0) * jnp.log(safe_base) - safe_base) * rate
    transmission = jnp.where(
        valid, max_inf_ref[...] * aux * is_infected_ref[...], 0.0)
    # Note: if downstream never reads per-agent transmission this output (and
    # its HBM write) could be dropped; GradJune stores it, so we keep it.
    transmission_out[...] = transmission

    # ---- per-tile partial group sums: partial[g] = sum(transmission | gid==g) ----
    gid = gid_ref[...]
    lane = lax.broadcasted_iota(jnp.int32, partial_out.shape, 1)
    sub = lax.broadcasted_iota(jnp.int32, partial_out.shape, 0)
    acc = jnp.zeros(partial_out.shape, jnp.float32)
    # TODO(synk): for large G switch to a sorted-by-group segment-sum path.
    for g in range(num_groups):                 # small G, static unroll
        s = jnp.sum(jnp.where(gid == g, transmission, 0.0))
        acc = jnp.where(lane == g, s, acc)      # exactly one lane per group
    partial_out[...] = jnp.where(sub == 0, acc, 0.0)   # only sublane 0 carries data


def _pass2_kernel(timer_ref, scaled_ref, gid_ref, susceptibility_ref,
                  is_infected_ref, infection_time_ref, threshold_ref,
                  new_infected_out, susceptibility_out, is_infected_out,
                  infection_time_out, *, num_groups):
    """InfectionNetworks 2/2 + IsInfectedSampler + infect_people."""
    now = timer_ref[0]

    gid = gid_ref[...]
    susceptibility = susceptibility_ref[...]

    # pressure[n] = scaled[gid[n]]   (G scalar-broadcast selects; one group/agent)
    pressure = jnp.zeros(gid.shape, jnp.float32)
    for g in range(num_groups):
        pressure = jnp.where(gid == g, scaled_ref[g], pressure)

    # scaled already folds delta_t * beta / group_count.
    x = pressure * susceptibility
    # 2-way hard Gumbel-softmax argmax == logistic threshold test:
    #   infected  <=>  log(1-exp(-x)) + g0 > -x + g1  <=>  x > softplus(g1 - g0)
    # The threshold is precomputed noise; no transcendentals (and no log(0))
    # are left in the sampler.  x == 0 never infects since threshold > 0.
    new_infected = jnp.where(x > threshold_ref[...], 1.0, 0.0)
    new_infected_out[...] = new_infected

    # ---- infect_people ----
    susceptibility_out[...] = jnp.maximum(0.0, susceptibility - new_infected)
    is_infected_out[...] = is_infected_ref[...] + new_infected
    infection_time_out[...] = (infection_time_ref[...]
                               + new_infected * (now - infection_time_ref[...]))

    # TODO(synk): SymptomsUpdater stage-transition sampling (symptom trajectory
    # tables / per-stage transitions) has no clean single-kernel equivalent
    # here and is omitted.


# --------------------------------------------------------------------------
# Layout helpers (one-time setup, hoisted out of the per-step path)
# --------------------------------------------------------------------------
def _tiling(n_agents, tile_rows):
    assert n_agents % _LANES == 0, "pad the agent count to a multiple of 128"
    rows = n_agents // _LANES
    tile_rows = int(min(tile_rows, rows))
    if tile_rows < rows and tile_rows % 8 != 0:
        tile_rows = max(8, (tile_rows // 8) * 8)
    num_tiles = -(-rows // tile_rows)
    rows_pad = num_tiles * tile_rows            # pad the tail tile, never collapse
    return rows_pad, tile_rows, num_tiles


def _pack(x, rows_pad, dtype=jnp.float32):
    """(N,) -> sublane-dense (rows_pad, 128); padding rows are zero."""
    rows = x.shape[0] // _LANES
    x = x.astype(dtype).reshape(rows, _LANES)
    if rows_pad > rows:
        x = jnp.pad(x, ((0, rows_pad - rows), (0, 0)))
    return x


def unpack(x_packed, n_agents):
    return x_packed.reshape(-1)[:n_agents]


def prepare_params(agent_static, group_id, network, *, tile_rows=512):
    """One-time setup: pack static per-agent parameters, precompute the gamma
    normalisation and the per-group beta / group-size scaling, fix the tiling."""
    f32 = jnp.float32
    n_agents = group_id.shape[0]
    rows_pad, tile_rows, num_tiles = _tiling(n_agents, tile_rows)
    num_groups = int(network["beta"].shape[0])
    assert num_groups <= 128, "large-G path (scalar-prefetch segment-sum) not implemented"
    packed = {
        "max_infectiousness": _pack(agent_static["max_infectiousness"], rows_pad),
        "shape": _pack(agent_static["shape"], rows_pad),
        "rate": _pack(agent_static["rate"], rows_pad),
        "shift": _pack(agent_static["shift"], rows_pad),
        "gamma_norm": _pack(jnp.exp(-lax.lgamma(agent_static["shape"].astype(f32))),
                            rows_pad),
        "group_id": _pack(group_id, rows_pad, dtype=jnp.int32),
    }
    return {
        "packed": packed,
        "beta_invc": (network["beta"].astype(f32)
                      * network["inv_group_count"].astype(f32)),
        "n_agents": n_agents,
        "rows_pad": rows_pad,
        "tile_rows": tile_rows,
        "num_tiles": num_tiles,
        "num_groups": num_groups,
    }


def pack_state(agent_state, rows_pad):
    return {k: _pack(v, rows_pad) for k, v in agent_state.items()}


# --------------------------------------------------------------------------
# Forward step
# --------------------------------------------------------------------------
def grad_june_forward(params, state, infection_threshold, timer_now, delta_time):
    """One GradJune forward step, everything in packed (rows_pad, 128) layout.

    params              : prepare_params() output (static, reused every step)
    state               : packed dynamic state {"susceptibility", "is_infected",
                          "infection_time"}
    infection_threshold : packed softplus(gumbel1 - gumbel0) noise threshold
    Returns (new_state, transmission, new_infected), all packed.
    """
    f32 = jnp.float32
    tr = params["tile_rows"]
    num_tiles = params["num_tiles"]
    rows_pad = params["rows_pad"]
    G = params["num_groups"]
    p = params["packed"]

    timer = jnp.array([timer_now, delta_time], dtype=f32)

    def tile_spec():
        return pl.BlockSpec((tr, _LANES), lambda i: (i, 0))

    smem_spec = pl.BlockSpec(memory_space=pltpu.MemorySpace.SMEM)
    cparams = pltpu.CompilerParams(dimension_semantics=("parallel",),
                                   vmem_limit_bytes=_VMEM_LIMIT_BYTES)

    # -------- pass 1: transmission + per-tile partial group sums (parallel) --------
    transmission, partial_sums = pl.pallas_call(
        functools.partial(_pass1_kernel, num_groups=G),
        grid=(num_tiles,),
        in_specs=[smem_spec] + [tile_spec() for _ in range(8)],
        out_specs=(tile_spec(),
                   pl.BlockSpec((8, _LANES), lambda i: (i, 0))),
        out_shape=(jax.ShapeDtypeStruct((rows_pad, _LANES), f32),
                   jax.ShapeDtypeStruct((num_tiles * 8, _LANES), f32)),
        compiler_params=cparams,
    )(
        timer,
        p["max_infectiousness"], p["shape"], p["rate"], p["shift"],
        p["gamma_norm"], state["infection_time"], state["is_infected"],
        p["group_id"],
    )

    # Tiny (num_tiles, G) glue: reduce per-tile partials and apply the precomputed
    # beta / group-size scaling plus delta_t.  Kept as one small XLA op so both
    # passes stay fully "parallel" (megacore-shardable on v7x).
    group_sum = jnp.sum(partial_sums, axis=0)[:G]
    scaled = group_sum * params["beta_invc"] * jnp.asarray(delta_time, f32)

    # -------- pass 2: sampler + infect_people (parallel) --------
    (new_infected, susceptibility, is_infected, infection_time) = pl.pallas_call(
        functools.partial(_pass2_kernel, num_groups=G),
        grid=(num_tiles,),
        in_specs=[smem_spec, smem_spec] + [tile_spec() for _ in range(5)],
        out_specs=tuple(tile_spec() for _ in range(4)),
        out_shape=tuple(jax.ShapeDtypeStruct((rows_pad, _LANES), f32)
                        for _ in range(4)),
        compiler_params=cparams,
    )(
        timer, scaled,
        p["group_id"], state["susceptibility"], state["is_infected"],
        state["infection_time"], infection_threshold,
    )

    new_state = {"susceptibility": susceptibility,
                 "is_infected": is_infected,
                 "infection_time": infection_time}
    return new_state, transmission, new_infected


# --------------------------------------------------------------------------
# Pure-JAX reference (same semantics, dense one-hot / Gumbel-argmax form)
# --------------------------------------------------------------------------
def _reference_forward(agent, group_id, network, timer_now, delta_time,
                       gumbel0, gumbel1):
    f32 = jnp.float32
    G = network["beta"].shape[0]
    t_shift = (timer_now - agent["infection_time"]) - agent["shift"]
    base = t_shift * agent["rate"]
    valid = base > 0.0
    safe_base = jnp.where(valid, base, 1.0)
    aux = (jnp.exp(-lax.lgamma(agent["shape"]))
           * jnp.power(safe_base, agent["shape"] - 1.0)
           * jnp.exp(-base) * agent["rate"])
    transmission = jnp.where(
        valid, agent["max_infectiousness"] * aux * agent["is_infected"], 0.0)

    onehot = jax.nn.one_hot(group_id, G, dtype=f32)          # (N, G)
    group_sum = transmission @ onehot                         # (G,)
    scaled = group_sum * network["beta"] * network["inv_group_count"]
    pressure = onehot @ scaled                                # (N,)

    x = delta_time * pressure * agent["susceptibility"]
    logit_inf = jnp.log(-jnp.expm1(-x)) + gumbel0
    logit_not = -x + gumbel1
    new_infected = jnp.where(logit_inf > logit_not, 1.0, 0.0)
    return transmission, logit_inf, logit_not, new_infected


if __name__ == "__main__":
    key = jax.random.PRNGKey(0)
    ks = jax.random.split(key, 10)

    N = 2048   # agents
    G = 8      # contact groups (households / companies / ...)
    f32 = jnp.float32

    timer_now = 5.0
    delta_time = 1.0

    is_infected = (jax.random.uniform(ks[0], (N,)) < 0.15).astype(f32)
    infection_time = jnp.where(
        is_infected > 0,
        jax.random.uniform(ks[1], (N,), minval=0.0, maxval=3.0), 0.0).astype(f32)

    agent_static = {
        "max_infectiousness": jax.random.uniform(ks[2], (N,), minval=1.0, maxval=2.0).astype(f32),
        "shape": jax.random.uniform(ks[3], (N,), minval=1.3, maxval=1.8).astype(f32),
        "rate": jax.random.uniform(ks[4], (N,), minval=0.4, maxval=0.7).astype(f32),
        "shift": jax.random.uniform(ks[5], (N,), minval=-3.0, maxval=-1.0).astype(f32),
    }
    agent_state = {
        "susceptibility": (1.0 - is_infected).astype(f32),
        "is_infected": is_infected,
        "infection_time": infection_time,
    }

    group_id = jax.random.randint(ks[6], (N,), 0, G)
    group_count = jnp.maximum(jax.nn.one_hot(group_id, G, dtype=f32).sum(axis=0), 1.0)
    network = {
        "beta": jax.random.uniform(ks[7], (G,), minval=0.5, maxval=2.0).astype(f32),
        "inv_group_count": (1.0 / group_count).astype(f32),
    }

    # Pre-sampled noise for IsInfectedSampler.  The 2-way Gumbel argmax collapses
    # to one logistic-noise threshold: infected <=> x > softplus(g1 - g0).
    u0 = jax.random.uniform(ks[8], (N,), minval=1e-6, maxval=1.0 - 1e-6)
    u1 = jax.random.uniform(ks[9], (N,), minval=1e-6, maxval=1.0 - 1e-6)
    gumbel0 = (-jnp.log(-jnp.log(u0))).astype(f32)
    gumbel1 = (-jnp.log(-jnp.log(u1))).astype(f32)
    infection_threshold = jax.nn.softplus(gumbel1 - gumbel0).astype(f32)

    # ---- one-time setup (hoisted out of the per-step path) ----
    params = prepare_params(agent_static, group_id, network, tile_rows=512)
    state = pack_state(agent_state, params["rows_pad"])
    threshold_packed = _pack(infection_threshold, params["rows_pad"])

    # ---- one forward step ----
    new_state, transmission_p, new_infected_p = grad_june_forward(
        params, state, threshold_packed, timer_now, delta_time)
    (new_state, transmission_p, new_infected_p) = jax.tree_util.tree_map(
        jax.block_until_ready, (new_state, transmission_p, new_infected_p))

    transmission = unpack(transmission_p, N)
    ni = unpack(new_infected_p, N)
    susceptibility_out = unpack(new_state["susceptibility"], N)
    is_infected_out = unpack(new_state["is_infected"], N)
    infection_time_out = unpack(new_state["infection_time"], N)

    # ---------------- sanity checks against a pure-JAX reference ----------------
    agent_ref = {**agent_static, **agent_state}
    ref_trans, ref_li, ref_ln, ref_new = _reference_forward(
        agent_ref, group_id, network, timer_now, delta_time, gumbel0, gumbel1)

    assert jnp.allclose(transmission, ref_trans, rtol=1e-4, atol=1e-6)

    assert jnp.all((ni == 0.0) | (ni == 1.0))
    # Sampler must match the reference wherever the decision is not razor-thin
    # (kernel and reference accumulate group sums in different orders).
    margin = jnp.abs(ref_li - ref_ln)
    assert jnp.all((ni == ref_new) | (margin < 1e-3))

    # infect_people updates, exact w.r.t. the kernel's own sample.
    assert jnp.allclose(susceptibility_out,
                        jnp.maximum(0.0, agent_state["susceptibility"] - ni))
    assert jnp.allclose(is_infected_out, agent_state["is_infected"] + ni)
    assert jnp.allclose(infection_time_out,
                        agent_state["infection_time"]
                        + ni * (timer_now - agent_state["infection_time"]))
    assert jnp.all(susceptibility_out >= 0.0)

    print("KERNEL_OK")
</pallas_src>

<mosaic_0001>
module attributes {stable_mosaic.version = 11 : i64} {
  func.func @_pass1_kernel(%arg0: i32, %arg1: memref<2xf32, #tpu.memory_space<smem>>, %arg2: memref<16x128xf32, #tpu.memory_space<vmem>>, %arg3: memref<16x128xf32, #tpu.memory_space<vmem>>, %arg4: memref<16x128xf32, #tpu.memory_space<vmem>>, %arg5: memref<16x128xf32, #tpu.memory_space<vmem>>, %arg6: memref<16x128xf32, #tpu.memory_space<vmem>>, %arg7: memref<16x128xf32, #tpu.memory_space<vmem>>, %arg8: memref<16x128xf32, #tpu.memory_space<vmem>>, %arg9: memref<16x128xi32, #tpu.memory_space<vmem>>, %arg10: memref<16x128xf32, #tpu.memory_space<vmem>>, %arg11: memref<8x128xf32, #tpu.memory_space<vmem>>) attributes {dimension_semantics = [#tpu.dimension_semantics<parallel>], iteration_bounds = array<i64: 1>, scalar_prefetch = 0 : i64, scratch_operands = 0 : i64, tpu.core_type = #tpu.core_type<tc>, window_params = [{transform_indices = @transform_0, window_bounds = array<i64: 2>}, {transform_indices = @transform_1, window_bounds = array<i64: 16, 128>}, {transform_indices = @transform_2, window_bounds = array<i64: 16, 128>}, {transform_indices = @transform_3, window_bounds = array<i64: 16, 128>}, {transform_indices = @transform_4, window_bounds = array<i64: 16, 128>}, {transform_indices = @transform_5, window_bounds = array<i64: 16, 128>}, {transform_indices = @transform_6, window_bounds = array<i64: 16, 128>}, {transform_indices = @transform_7, window_bounds = array<i64: 16, 128>}, {transform_indices = @transform_8, window_bounds = array<i64: 16, 128>}, {transform_indices = @transform_9, window_bounds = array<i64: 16, 128>}, {transform_indices = @transform_10, window_bounds = array<i64: 8, 128>}]} {
    %c0 = arith.constant 0 : index
    %0 = memref.load %arg1[%c0] : memref<2xf32, #tpu.memory_space<smem>>
    %c0_0 = arith.constant 0 : index
    %c0_1 = arith.constant 0 : index
    %1 = vector.load %arg7[%c0_0, %c0_1] : memref<16x128xf32, #tpu.memory_space<vmem>>, vector<16x128xf32>
    %2 = vector.broadcast %0 : f32 to vector<16x128xf32>
    %3 = arith.subf %2, %1 : vector<16x128xf32>
    %c0_2 = arith.constant 0 : index
    %c0_3 = arith.constant 0 : index
    %4 = vector.load %arg5[%c0_2, %c0_3] : memref<16x128xf32, #tpu.memory_space<vmem>>, vector<16x128xf32>
    %5 = arith.subf %3, %4 : vector<16x128xf32>
    %c0_4 = arith.constant 0 : index
    %c0_5 = arith.constant 0 : index
    %6 = vector.load %arg4[%c0_4, %c0_5] : memref<16x128xf32, #tpu.memory_space<vmem>>, vector<16x128xf32>
    %7 = arith.mulf %5, %6 : vector<16x128xf32>
    %cst = arith.constant 0.000000e+00 : f32
    %8 = vector.broadcast %cst : f32 to vector<16x128xf32>
    %9 = arith.cmpf ogt, %7, %8 : vector<16x128xf32>
    %cst_6 = arith.constant 1.000000e+00 : f32
    %10 = vector.broadcast %cst_6 : f32 to vector<16x128xf32>
    %11 = arith.select %9, %7, %10 : vector<16x128xi1>, vector<16x128xf32>
    %c0_7 = arith.constant 0 : index
    %c0_8 = arith.constant 0 : index
    %12 = vector.load %arg6[%c0_7, %c0_8] : memref<16x128xf32, #tpu.memory_space<vmem>>, vector<16x128xf32>
    %c0_9 = arith.constant 0 : index
    %c0_10 = arith.constant 0 : index
    %13 = vector.load %arg3[%c0_9, %c0_10] : memref<16x128xf32, #tpu.memory_space<vmem>>, vector<16x128xf32>
    %cst_11 = arith.constant 1.000000e+00 : f32
    %14 = vector.broadcast %cst_11 : f32 to vector<16x128xf32>
    %15 = arith.subf %13, %14 : vector<16x128xf32>
    %16 = math.log %11 : vector<16x128xf32>
    %17 = arith.mulf %15, %16 : vector<16x128xf32>
    %18 = arith.subf %17, %11 : vector<16x128xf32>
    %19 = math.exp %18 : vector<16x128xf32>
    %20 = arith.mulf %12, %19 : vector<16x128xf32>
    %21 = arith.mulf %20, %6 : vector<16x128xf32>
    %c0_12 = arith.constant 0 : index
    %c0_13 = arith.constant 0 : index
    %22 = vector.load %arg2[%c0_12, %c0_13] : memref<16x128xf32, #tpu.memory_space<vmem>>, vector<16x128xf32>
    %23 = arith.mulf %22, %21 : vector<16x128xf32>
    %c0_14 = arith.constant 0 : index
    %c0_15 = arith.constant 0 : index
    %24 = vector.load %arg8[%c0_14, %c0_15] : memref<16x128xf32, #tpu.memory_space<vmem>>, vector<16x128xf32>
    %25 = arith.mulf %23, %24 : vector<16x128xf32>
    %cst_16 = arith.constant 0.000000e+00 : f32
    %26 = vector.broadcast %cst_16 : f32 to vector<16x128xf32>
    %27 = arith.select %9, %25, %26 : vector<16x128xi1>, vector<16x128xf32>
    %c0_17 = arith.constant 0 : index
    %c0_18 = arith.constant 0 : index
    %28 = vector.load %arg10[%c0_17, %c0_18] : memref<16x128xf32, #tpu.memory_space<vmem>>, vector<16x128xf32>
    tpu.vector_store %arg10[%c0_17, %c0_18], %27 {strides = array<i32>} : memref<16x128xf32, #tpu.memory_space<vmem>>, vector<16x128xf32>,
    %c0_19 = arith.constant 0 : index
    %c0_20 = arith.constant 0 : index
    %29 = vector.load %arg9[%c0_19, %c0_20] : memref<16x128xi32, #tpu.memory_space<vmem>>, vector<16x128xi32>
    %30 = tpu.iota {dimensions = array<i32: 1>} : vector<8x128xi32>
    %31 = tpu.iota {dimensions = array<i32: 0>} : vector<8x128xi32>
    %cst_21 = arith.constant 0.000000e+00 : f32
    %32 = vector.broadcast %cst_21 : f32 to vector<8x128xf32>
    %c0_i32 = arith.constant 0 : i32
    %33 = vector.broadcast %c0_i32 : i32 to vector<16x128xi32>
    %34 = arith.cmpi eq, %29, %33 : vector<16x128xi32>
    %cst_22 = arith.constant 0.000000e+00 : f32
    %35 = vector.broadcast %cst_22 : f32 to vector<16x128xf32>
    %36 = arith.select %34, %27, %35 : vector<16x128xi1>, vector<16x128xf32>
    %37 = vector.shape_cast %36 : vector<16x128xf32> to vector<1x16x128xf32>
    %cst_23 = arith.constant dense<0.000000e+00> : vector<1xf32>
    %38 = vector.multi_reduction <add>, %37, %cst_23 [1, 2] : vector<1x16x128xf32> to vector<1xf32>
    %39 = vector.shape_cast %38 : vector<1xf32> to vector<1x1x1xf32>
    %40 = vector.extract %39[0, 0, 0] : f32 from vector<1x1x1xf32>
    %c0_i32_24 = arith.constant 0 : i32
    %41 = vector.broadcast %c0_i32_24 : i32 to vector<8x128xi32>
    %42 = arith.cmpi eq, %30, %41 : vector<8x128xi32>
    %43 = vector.broadcast %40 : f32 to vector<8x128xf32>
    %44 = arith.select %42, %43, %32 : vector<8x128xi1>, vector<8x128xf32>
    %c1_i32 = arith.constant 1 : i32
    %45 = vector.broadcast %c1_i32 : i32 to vector<16x128xi32>
    %46 = arith.cmpi eq, %29, %45 : vector<16x128xi32>
    %cst_25 = arith.constant 0.000000e+00 : f32
    %47 = vector.broadcast %cst_25 : f32 to vector<16x128xf32>
    %48 = arith.select %46, %27, %47 : vector<16x128xi1>, vector<16x128xf32>
    %49 = vector.shape_cast %48 : vector<16x128xf32> to vector<1x16x128xf32>
    %cst_26 = arith.constant dense<0.000000e+00> : vector<1xf32>
    %50 = vector.multi_reduction <add>, %49, %cst_26 [1, 2] : vector<1x16x128xf32> to vector<1xf32>
    %51 = vector.shape_cast %50 : vector<1xf32> to vector<1x1x1xf32>
    %52 = vector.extract %51[0, 0, 0] : f32 from vector<1x1x1xf32>
    %c1_i32_27 = arith.constant 1 : i32
    %53 = vector.broadcast %c1_i32_27 : i32 to vector<8x128xi32>
    %54 = arith.cmpi eq, %30, %53 : vector<8x128xi32>
    %55 = vector.broadcast %52 : f32 to vector<8x128xf32>
    %56 = arith.select %54, %55, %44 : vector<8x128xi1>, vector<8x128xf32>
    %c2_i32 = arith.constant 2 : i32
    %57 = vector.broadcast %c2_i32 : i32 to vector<16x128xi32>
    %58 = arith.cmpi eq, %29, %57 : vector<16x128xi32>
    %cst_28 = arith.constant 0.000000e+00 : f32
    %59 = vector.broadcast %cst_28 : f32 to vector<16x128xf32>
    %60 = arith.select %58, %27, %59 : vector<16x128xi1>, vector<16x128xf32>
    %61 = vector.shape_cast %60 : vector<16x128xf32> to vector<1x16x128xf32>
    %cst_29 = arith.constant dense<0.000000e+00> : vector<1xf32>
    %62 = vector.multi_reduction <add>, %61, %cst_29 [1, 2] : vector<1x16x128xf32> to vector<1xf32>
    %63 = vector.shape_cast %62 : vector<1xf32> to vector<1x1x1xf32>
    %64 = vector.extract %63[0, 0, 0] : f32 from vector<1x1x1xf32>
    %c2_i32_30 = arith.constant 2 : i32
    %65 = vector.broadcast %c2_i32_30 : i32 to vector<8x128xi32>
    %66 = arith.cmpi eq, %30, %65 : vector<8x128xi32>
    %67 = vector.broadcast %64 : f32 to vector<8x128xf32>
    %68 = arith.select %66, %67, %56 : vector<8x128xi1>, vector<8x128xf32>
    %c3_i32 = arith.constant 3 : i32
    %69 = vector.broadcast %c3_i32 : i32 to vector<16x128xi32>
    %70 = arith.cmpi eq, %29, %69 : vector<16x128xi32>
    %cst_31 = arith.constant 0.000000e+00 : f32
    %71 = vector.broadcast %cst_31 : f32 to vector<16x128xf32>
    %72 = arith.select %70, %27, %71 : vector<16x128xi1>, vector<16x128xf32>
    %73 = vector.shape_cast %72 : vector<16x128xf32> to vector<1x16x128xf32>
    %cst_32 = arith.constant dense<0.000000e+00> : vector<1xf32>
    %74 = vector.multi_reduction <add>, %73, %cst_32 [1, 2] : vector<1x16x128xf32> to vector<1xf32>
    %75 = vector.shape_cast %74 : vector<1xf32> to vector<1x1x1xf32>
    %76 = vector.extract %75[0, 0, 0] : f32 from vector<1x1x1xf32>
    %c3_i32_33 = arith.constant 3 : i32
    %77 = vector.broadcast %c3_i32_33 : i32 to vector<8x128xi32>
    %78 = arith.cmpi eq, %30, %77 : vector<8x128xi32>
    %79 = vector.broadcast %76 : f32 to vector<8x128xf32>
    %80 = arith.select %78, %79, %68 : vector<8x128xi1>, vector<8x128xf32>
    %c4_i32 = arith.constant 4 : i32
    %81 = vector.broadcast %c4_i32 : i32 to vector<16x128xi32>
    %82 = arith.cmpi eq, %29, %81 : vector<16x128xi32>
    %cst_34 = arith.constant 0.000000e+00 : f32
    %83 = vector.broadcast %cst_34 : f32 to vector<16x128xf32>
    %84 = arith.select %82, %27, %83 : vector<16x128xi1>, vector<16x128xf32>
    %85 = vector.shape_cast %84 : vector<16x128xf32> to vector<1x16x128xf32>
    %cst_35 = arith.constant dense<0.000000e+00> : vector<1xf32>
    %86 = vector.multi_reduction <add>, %85, %cst_35 [1, 2] : vector<1x16x128xf32> to vector<1xf32>
    %87 = vector.shape_cast %86 : vector<1xf32> to vector<1x1x1xf32>
    %88 = vector.extract %87[0, 0, 0] : f32 from vector<1x1x1xf32>
    %c4_i32_36 = arith.constant 4 : i32
    %89 = vector.broadcast %c4_i32_36 : i32 to vector<8x128xi32>
    %90 = arith.cmpi eq, %30, %89 : vector<8x128xi32>
    %91 = vector.broadcast %88 : f32 to vector<8x128xf32>
    %92 = arith.select %90, %91, %80 : vector<8x128xi1>, vector<8x128xf32>
    %c5_i32 = arith.constant 5 : i32
    %93 = vector.broadcast %c5_i32 : i32 to vector<16x128xi32>
    %94 = arith.cmpi eq, %29, %93 : vector<16x128xi32>
    %cst_37 = arith.constant 0.000000e+00 : f32
    %95 = vector.broadcast %cst_37 : f32 to vector<16x128xf32>
    %96 = arith.select %94, %27, %95 : vector<16x128xi1>, vector<16x128xf32>
    %97 = vector.shape_cast %96 : vector<16x128xf32> to vector<1x16x128xf32>
    %cst_38 = arith.constant dense<0.000000e+00> : vector<1xf32>
    %98 = vector.multi_reduction <add>, %97, %cst_38 [1, 2] : vector<1x16x128xf32> to vector<1xf32>
    %99 = vector.shape_cast %98 : vector<1xf32> to vector<1x1x1xf32>
    %100 = vector.extract %99[0, 0, 0] : f32 from vector<1x1x1xf32>
    %c5_i32_39 = arith.constant 5 : i32
    %101 = vector.broadcast %c5_i32_39 : i32 to vector<8x128xi32>
    %102 = arith.cmpi eq, %30, %101 : vector<8x128xi32>
    %103 = vector.broadcast %100 : f32 to vector<8x128xf32>
    %104 = arith.select %102, %103, %92 : vector<8x128xi1>, vector<8x128xf32>
    %c6_i32 = arith.constant 6 : i32
    %105 = vector.broadcast %c6_i32 : i32 to vector<16x128xi32>
    %106 = arith.cmpi eq, %29, %105 : vector<16x128xi32>
    %cst_40 = arith.constant 0.000000e+00 : f32
    %107 = vector.broadcast %cst_40 : f32 to vector<16x128xf32>
    %108 = arith.select %106, %27, %107 : vector<16x128xi1>, vector<16x128xf32>
    %109 = vector.shape_cast %108 : vector<16x128xf32> to vector<1x16x128xf32>
    %cst_41 = arith.constant dense<0.000000e+00> : vector<1xf32>
    %110 = vector.multi_reduction <add>, %109, %cst_41 [1, 2] : vector<1x16x128xf32> to vector<1xf32>
    %111 = vector.shape_cast %110 : vector<1xf32> to vector<1x1x1xf32>
    %112 = vector.extract %111[0, 0, 0] : f32 from vector<1x1x1xf32>
    %c6_i32_42 = arith.constant 6 : i32
    %113 = vector.broadcast %c6_i32_42 : i32 to vector<8x128xi32>
    %114 = arith.cmpi eq, %30, %113 : vector<8x128xi32>
    %115 = vector.broadcast %112 : f32 to vector<8x128xf32>
    %116 = arith.select %114, %115, %104 : vector<8x128xi1>, vector<8x128xf32>
    %c7_i32 = arith.constant 7 : i32
    %117 = vector.broadcast %c7_i32 : i32 to vector<16x128xi32>
    %118 = arith.cmpi eq, %29, %117 : vector<16x128xi32>
    %cst_43 = arith.constant 0.000000e+00 : f32
    %119 = vector.broadcast %cst_43 : f32 to vector<16x128xf32>
    %120 = arith.select %118, %27, %119 : vector<16x128xi1>, vector<16x128xf32>
    %121 = vector.shape_cast %120 : vector<16x128xf32> to vector<1x16x128xf32>
    %cst_44 = arith.constant dense<0.000000e+00> : vector<1xf32>
    %122 = vector.multi_reduction <add>, %121, %cst_44 [1, 2] : vector<1x16x128xf32> to vector<1xf32>
    %123 = vector.shape_cast %122 : vector<1xf32> to vector<1x1x1xf32>
    %124 = vector.extract %123[0, 0, 0] : f32 from vector<1x1x1xf32>
    %c7_i32_45 = arith.constant 7 : i32
    %125 = vector.broadcast %c7_i32_45 : i32 to vector<8x128xi32>
    %126 = arith.cmpi eq, %30, %125 : vector<8x128xi32>
    %127 = vector.broadcast %124 : f32 to vector<8x128xf32>
    %128 = arith.select %126, %127, %116 : vector<8x128xi1>, vector<8x128xf32>
    %c0_i32_46 = arith.constant 0 : i32
    %129 = vector.broadcast %c0_i32_46 : i32 to vector<8x128xi32>
    %130 = arith.cmpi eq, %31, %129 : vector<8x128xi32>
    %cst_47 = arith.constant 0.000000e+00 : f32
    %131 = vector.broadcast %cst_47 : f32 to vector<8x128xf32>
    %132 = arith.select %130, %128, %131 : vector<8x128xi1>, vector<8x128xf32>
    %c0_48 = arith.constant 0 : index
    %c0_49 = arith.constant 0 : index
    %133 = vector.load %arg11[%c0_48, %c0_49] : memref<8x128xf32, #tpu.memory_space<vmem>>, vector<8x128xf32>
    tpu.vector_store %arg11[%c0_48, %c0_49], %132 {strides = array<i32>} : memref<8x128xf32, #tpu.memory_space<vmem>>, vector<8x128xf32>,
    return
  }
  func.func @transform_0(%arg0: i32) -> i32 {
    %c0_i32 = arith.constant 0 : i32
    %c0_i32_0 = arith.constant 0 : i32
    return %c0_i32 : i32
  }
  func.func @transform_1(%arg0: i32) -> (i32, i32) {
    %c0_i32 = arith.constant 0 : i32
    %c0_i32_0 = arith.constant 0 : i32
    return %arg0, %c0_i32 : i32, i32
  }
  func.func @transform_2(%arg0: i32) -> (i32, i32) {
    %c0_i32 = arith.constant 0 : i32
    %c0_i32_0 = arith.constant 0 : i32
    return %arg0, %c0_i32 : i32, i32
  }
  func.func @transform_3(%arg0: i32) -> (i32, i32) {
    %c0_i32 = arith.constant 0 : i32
    %c0_i32_0 = arith.constant 0 : i32
    return %arg0, %c0_i32 : i32, i32
  }
  func.func @transform_4(%arg0: i32) -> (i32, i32) {
    %c0_i32 = arith.constant 0 : i32
    %c0_i32_0 = arith.constant 0 : i32
    return %arg0, %c0_i32 : i32, i32
  }
  func.func @transform_5(%arg0: i32) -> (i32, i32) {
    %c0_i32 = arith.constant 0 : i32
    %c0_i32_0 = arith.constant 0 : i32
    return %arg0, %c0_i32 : i32, i32
  }
  func.func @transform_6(%arg0: i32) -> (i32, i32) {
    %c0_i32 = arith.constant 0 : i32
    %c0_i32_0 = arith.constant 0 : i32
    return %arg0, %c0_i32 : i32, i32
  }
  func.func @transform_7(%arg0: i32) -> (i32, i32) {
    %c0_i32 = arith.constant 0 : i32
    %c0_i32_0 = arith.constant 0 : i32
    return %arg0, %c0_i32 : i32, i32
  }
  func.func @transform_8(%arg0: i32) -> (i32, i32) {
    %c0_i32 = arith.constant 0 : i32
    %c0_i32_0 = arith.constant 0 : i32
    return %arg0, %c0_i32 : i32, i32
  }
  func.func @transform_9(%arg0: i32) -> (i32, i32) {
    %c0_i32 = arith.constant 0 : i32
    %c0_i32_0 = arith.constant 0 : i32
    return %arg0, %c0_i32 : i32, i32
  }
  func.func @transform_10(%arg0: i32) -> (i32, i32) {
    %c0_i32 = arith.constant 0 : i32
    %c0_i32_0 = arith.constant 0 : i32
    return %arg0, %c0_i32 : i32, i32
  }
}

</mosaic_0001>

<llo_original>
// kernel: tpu_custom_call.1
$region0: #{tpu_custom_call.1}
  #allocation0 [shape = 'u32[]', space=smem, size = 0x4, offset = 0x4, fixed_abs, tag = 'smem constant byte address 0x4 - core index']
  #allocation1 [shape = 'u32[144,128]{1,0:T(1,128)}', space=vmem, size = 0x12000, scoped, tag = 'internal scratch']
  %s0 = inlined_call_operand.hbm [shape: f32[2], index: 0, kind: input, shape index: {}]
  %s1 = inlined_call_operand.hbm [shape: f32[16,128], index: 1, kind: input, shape index: {}]
  %s2 = inlined_call_operand.hbm [shape: f32[16,128], index: 2, kind: input, shape index: {}]
  %s3 = inlined_call_operand.hbm [shape: f32[16,128], index: 3, kind: input, shape index: {}]
  %s4 = inlined_call_operand.hbm [shape: f32[16,128], index: 4, kind: input, shape index: {}]
  %s5 = inlined_call_operand.vmem [shape: f32[16,128], index: 5, kind: input, shape index: {}]
  %s6 = inlined_call_operand.hbm [shape: f32[16,128], index: 6, kind: input, shape index: {}]
  %s7 = inlined_call_operand.hbm [shape: f32[16,128], index: 7, kind: input, shape index: {}]
  %s8 = inlined_call_operand.hbm [shape: s32[16,128], index: 8, kind: input, shape index: {}]
  %s9 = inlined_call_operand.hbm [shape: f32[16,128], index: 9, kind: output, shape index: {0}]
  %s10 = inlined_call_operand.hbm [shape: f32[8,128], index: 10, kind: output, shape index: {1}]
  %11 = xla_tuple %s9, %s10
  %s12 = sld [smem:[#allocation0]]
  $region86: #{tpu_custom_call.1} parent=0
    _
  %s14 = ssub.s32 1, %s12
  %s15 = scalar_select 0, %s14, %s12
  $region1: #{tpu_custom_call.1} parent=0
    #allocation2 [shape = 'u8[512]{0}', space=smem, size = 0x200, scoped, tag = 'input window, operand 0, single buffered']
    #allocation3 [shape = 's32[1]{0}', space=sflag, size = 0x4, scoped, tag = 'scoped memory for tpu_custom_call.1']
    #allocation4 [shape = 's32[1]{0}', space=sflag, size = 0x4, scoped, tag = 'scoped memory for tpu_custom_call.1']
    #allocation5 [shape = 's32[1]{0}', space=sflag, size = 0x4, scoped, tag = 'scoped memory for tpu_custom_call.1']
    #allocation6 [shape = 'u8[8192]{0}', space=vmem, size = 0x2000, scoped, tag = 'input window, operand 1, single buffered']
    #allocation7 [shape = 'u8[8192]{0}', space=vmem, size = 0x2000, scoped, tag = 'input window, operand 2, single buffered']
    #allocation8 [shape = 's32[1]{0}', space=sflag, size = 0x4, scoped, tag = 'scoped memory for tpu_custom_call.1']
    #allocation9 [shape = 'u8[8192]{0}', space=vmem, size = 0x2000, scoped, tag = 'input window, operand 3, single buffered']
    #allocation10 [shape = 'u8[8192]{0}', space=vmem, size = 0x2000, scoped, tag = 'input window, operand 4, single buffered']
    #allocation11 [shape = 's32[1]{0}', space=sflag, size = 0x4, scoped, tag = 'scoped memory for tpu_custom_call.1']
    #allocation12 [shape = 'u8[8192]{0}', space=vmem, size = 0x2000, scoped, tag = 'input window, operand 6, single buffered']
    #allocation13 [shape = 'u8[8192]{0}', space=vmem, size = 0x2000, scoped, tag = 'input window, operand 7, single buffered']
    #allocation14 [shape = 's32[1]{0}', space=sflag, size = 0x4, scoped, tag = 'scoped memory for tpu_custom_call.1']
    #allocation15 [shape = 'u8[8192]{0}', space=vmem, size = 0x2000, scoped, tag = 'input window, operand 8, single buffered']
    #allocation16 [shape = 'u8[8192]{0}', space=vmem, size = 0x2000, scoped, tag = 'output window, operand 0, single buffered']
    #allocation17 [shape = 'u8[4096]{0}', space=vmem, size = 0x1000, scoped, tag = 'output window, operand 1, single buffered']
    #allocation18 [shape = 's32[1]{0}', space=sflag, size = 0x4, scoped, tag = 'scoped memory for tpu_custom_call.1']
    %16 = vsyncpa [#allocation5], 0
    %17 = vsyncpa [#allocation3], 0
    %18 = vsyncpa [#allocation8], 0
    %19 = vsyncpa [#allocation11], 0
    %20 = vsyncpa [#allocation14], 0
    %21 = vsyncpa [#allocation4], 0
    %22 = vsyncpa [#allocation18], 0
    // Predicated region
    $region2: #{tpu_custom_call.1} parent=1 // pred_check
      _
    $region3: #{tpu_custom_call.1} parent=1 // pred_check_branch
      %24 = sbr.rel (0) target = $region5
    $region4: #{tpu_custom_call.1} parent=1 // pred_region
      %s26 = ssub.s32 16, 16
      %27 = vsyncadd [#allocation5], %s26
      %30 = dma.hbm_to_smem %s0, 16, [#allocation2], [#allocation5]
    $region5: #{tpu_custom_call.1} parent=1 // pred_fallthru
      _
    // Predicated region
    $region6: #{tpu_custom_call.1} parent=1 // pred_check
      _
    $region7: #{tpu_custom_call.1} parent=1 // pred_check_branch
      %32 = sbr.rel (0) target = $region9
    $region8: #{tpu_custom_call.1} parent=1 // pred_region
      %s34 = ssub.s32 256, 256
      %35 = vsyncadd [#allocation3], %s34
      %s36 = sshll.u32 [#allocation6], 4
      %s37 = int_to_ptr.vmem [resolvable:$true] %s36
      %42 = dma.hbm_to_vmem [thread:$0]  %s1, 256, %s37, [#allocation3], 128, 128, 8
    $region9: #{tpu_custom_call.1} parent=1 // pred_fallthru
      _
    // Predicated region
    $region10: #{tpu_custom_call.1} parent=1 // pred_check
      _
    $region11: #{tpu_custom_call.1} parent=1 // pred_check_branch
      %44 = sbr.rel (0) target = $region13
    $region12: #{tpu_custom_call.1} parent=1 // pred_region
      %s46 = ssub.s32 256, 256
      %47 = vsyncadd [#allocation8], %s46
      %s48 = sshll.u32 [#allocation7], 4
      %s49 = int_to_ptr.vmem [resolvable:$true] %s48
      %54 = dma.hbm_to_vmem [thread:$0]  %s2, 256, %s49, [#allocation8], 128, 128, 8
    $region13: #{tpu_custom_call.1} parent=1 // pred_fallthru
      _
    // Predicated region
    $region14: #{tpu_custom_call.1} parent=1 // pred_check
      _
    $region15: #{tpu_custom_call.1} parent=1 // pred_check_branch
      %56 = sbr.rel (0) target = $region17
    $region16: #{tpu_custom_call.1} parent=1 // pred_region
      %s58 = ssub.s32 256, 256
      %59 = vsyncadd [#allocation8], %s58
      %s60 = sshll.u32 [#allocation9], 4
      %s61 = int_to_ptr.vmem [resolvable:$true] %s60
      %66 = dma.hbm_to_vmem [thread:$0]  %s3, 256, %s61, [#allocation8], 128, 128, 8
    $region17: #{tpu_custom_call.1} parent=1 // pred_fallthru
      _
    // Predicated region
    $region18: #{tpu_custom_call.1} parent=1 // pred_check
      _
    $region19: #{tpu_custom_call.1} parent=1 // pred_check_branch
      %68 = sbr.rel (0) target = $region21
    $region20: #{tpu_custom_call.1} parent=1 // pred_region
      %s70 = ssub.s32 256, 256
      %71 = vsyncadd [#allocation11], %s70
      %s72 = sshll.u32 [#allocation10], 4
      %s73 = int_to_ptr.vmem [resolvable:$true] %s72
      %78 = dma.hbm_to_vmem [thread:$0]  %s4, 256, %s73, [#allocation11], 128, 128, 8
    $region21: #{tpu_custom_call.1} parent=1 // pred_fallthru
      _
    // Predicated region
    $region22: #{tpu_custom_call.1} parent=1 // pred_check
      _
    $region23: #{tpu_custom_call.1} parent=1 // pred_check_branch
      %80 = sbr.rel (0) target = $region25
    $region24: #{tpu_custom_call.1} parent=1 // pred_region
      _
    $region25: #{tpu_custom_call.1} parent=1 // pred_fallthru
      _
    // Predicated region
    $region26: #{tpu_custom_call.1} parent=1 // pred_check
      _
    $region27: #{tpu_custom_call.1} parent=1 // pred_check_branch
      %82 = sbr.rel (0) target = $region29
    $region28: #{tpu_custom_call.1} parent=1 // pred_region
      %s84 = ssub.s32 256, 256
      %85 = vsyncadd [#allocation11], %s84
      %s86 = sshll.u32 [#allocation12], 4
      %s87 = int_to_ptr.vmem [resolvable:$true] %s86
      %92 = dma.hbm_to_vmem [thread:$0]  %s6, 256, %s87, [#allocation11], 128, 128, 8
    $region29: #{tpu_custom_call.1} parent=1 // pred_fallthru
      _
    // Predicated region
    $region30: #{tpu_custom_call.1} parent=1 // pred_check
      _
    $region31: #{tpu_custom_call.1} parent=1 // pred_check_branch
      %94 = sbr.rel (0) target = $region33
    $region32: #{tpu_custom_call.1} parent=1 // pred_region
      %s96 = ssub.s32 256, 256
      %97 = vsyncadd [#allocation14], %s96
      %s98 = sshll.u32 [#allocation13], 4
      %s99 = int_to_ptr.vmem [resolvable:$true] %s98
      %104 = dma.hbm_to_vmem [thread:$0]  %s7, 256, %s99, [#allocation14], 128, 128, 8
    $region33: #{tpu_custom_call.1} parent=1 // pred_fallthru
      _
    // Predicated region
    $region34: #{tpu_custom_call.1} parent=1 // pred_check
      _
    $region35: #{tpu_custom_call.1} parent=1 // pred_check_branch
      %106 = sbr.rel (0) target = $region37
    $region36: #{tpu_custom_call.1} parent=1 // pred_region
      %s108 = ssub.s32 256, 256
      %109 = vsyncadd [#allocation14], %s108
      %s110 = sshll.u32 [#allocation15], 4
      %s111 = int_to_ptr.vmem [resolvable:$true] %s110
      %116 = dma.hbm_to_vmem [thread:$0]  %s8, 256, %s111, [#allocation14], 128, 128, 8
    $region37: #{tpu_custom_call.1} parent=1 // pred_fallthru
      _
    // Predicated region
    $region38: #{tpu_custom_call.1} parent=1 // pred_check
      _
    $region39: #{tpu_custom_call.1} parent=1 // pred_check_branch
      %118 = sbr.rel (0) target = $region41
    $region40: #{tpu_custom_call.1} parent=1 // pred_region
      %119 = dma.done [#allocation5], 16
    $region41: #{tpu_custom_call.1} parent=1 // pred_fallthru
      _
    // Predicated region
    $region42: #{tpu_custom_call.1} parent=1 // pred_check
      _
    $region43: #{tpu_custom_call.1} parent=1 // pred_check_branch
      %121 = sbr.rel (0) target = $region45
    $region44: #{tpu_custom_call.1} parent=1 // pred_region
      %122 = dma.done [#allocation3], 256
    $region45: #{tpu_custom_call.1} parent=1 // pred_fallthru
      _
    // Predicated region
    $region46: #{tpu_custom_call.1} parent=1 // pred_check
      _
    $region47: #{tpu_custom_call.1} parent=1 // pred_check_branch
      %124 = sbr.rel (0) target = $region49
    $region48: #{tpu_custom_call.1} parent=1 // pred_region
      %125 = dma.done [#allocation8], 256
    $region49: #{tpu_custom_call.1} parent=1 // pred_fallthru
      _
    // Predicated region
    $region50: #{tpu_custom_call.1} parent=1 // pred_check
      _
    $region51: #{tpu_custom_call.1} parent=1 // pred_check_branch
      %127 = sbr.rel (0) target = $region53
    $region52: #{tpu_custom_call.1} parent=1 // pred_region
      %128 = dma.done [#allocation8], 256
    $region53: #{tpu_custom_call.1} parent=1 // pred_fallthru
      _
    // Predicated region
    $region54: #{tpu_custom_call.1} parent=1 // pred_check
      _
    $region55: #{tpu_custom_call.1} parent=1 // pred_check_branch
      %130 = sbr.rel (0) target = $region57
    $region56: #{tpu_custom_call.1} parent=1 // pred_region
      %131 = dma.done [#allocation11], 256
    $region57: #{tpu_custom_call.1} parent=1 // pred_fallthru
      _
    // Predicated region
    $region58: #{tpu_custom_call.1} parent=1 // pred_check
      _
    $region59: #{tpu_custom_call.1} parent=1 // pred_check_branch
      %133 = sbr.rel (0) target = $region61
    $region60: #{tpu_custom_call.1} parent=1 // pred_region
      %134 = dma.done [#allocation11], 256
    $region61: #{tpu_custom_call.1} parent=1 // pred_fallthru
      _
    // Predicated region
    $region62: #{tpu_custom_call.1} parent=1 // pred_check
      _
    $region63: #{tpu_custom_call.1} parent=1 // pred_check_branch
      %136 = sbr.rel (0) target = $region65
    $region64: #{tpu_custom_call.1} parent=1 // pred_region
      %137 = dma.done [#allocation14], 256
    $region65: #{tpu_custom_call.1} parent=1 // pred_fallthru
      _
    // Predicated region
    $region66: #{tpu_custom_call.1} parent=1 // pred_check
      _
    $region67: #{tpu_custom_call.1} parent=1 // pred_check_branch
      %139 = sbr.rel (0) target = $region69
    $region68: #{tpu_custom_call.1} parent=1 // pred_region
      %140 = dma.done [#allocation14], 256
    $region69: #{tpu_custom_call.1} parent=1 // pred_fallthru
      _
    %141 = sfence
    %s142 = sld [smem:[#allocation2]]
    %v143 = vld [vmem:[#allocation12] sm:$0xff]
    %v144 = vld [vmem:[#allocation12 + $0x8] sm:$0xff]
    %v145 = vstv %s142
    %v146 = vsub.f32 %v145, %v143
    %v147 = vsub.f32 %v145, %v144
    %v148 = vld [vmem:[#allocation10] sm:$0xff]
    %v149 = vld [vmem:[#allocation10 + $0x8] sm:$0xff]
    %v150 = vsub.f32 %v146, %v148
    %v151 = vsub.f32 %v147, %v149
    %v152 = vld [vmem:[#allocation9] sm:$0xff]
    %v153 = vld [vmem:[#allocation9 + $0x8] sm:$0xff]
    %v154 = vmul.f32 %v150, %v152
    %v155 = vmul.f32 %v151, %v153
    %vm156 = vcmp.gt.f32.partialorder %v154, 0.0
    %vm157 = vcmp.gt.f32.partialorder %v155, 0.0
    %v158 = vsel %vm156, %v154, 1.0
    %v159 = vsel %vm157, %v155, 1.0
    %v160 = vld [vmem:[%s5] sm:$0xff]
    %v161 = vld [vmem:[%s5 + $0x8] sm:$0xff]
    %v162 = vld [vmem:[#allocation7] sm:$0xff]
    %v163 = vld [vmem:[#allocation7 + $0x8] sm:$0xff]
    %v164 = vsub.f32 %v162, 1.0
    %v165 = vsub.f32 %v163, 1.0
    %v166 = vlog2.pop %v158
    %v167 = vmul.f32 %v166, 0.6931472
    %v168 = vlog2.pop %v159
    %v169 = vmul.f32 %v168, 0.6931472
    %v170 = vmul.f32 %v164, %v167
    %v171 = vmul.f32 %v165, %v169
    %v172 = vsub.f32 %v170, %v158
    %v173 = vsub.f32 %v171, %v159
    %v174 = vmul.f32 %v172, 1.442695
    %v175 = vpow.pop %v174
    %v176 = vmul.f32 %v173, 1.442695
    %v177 = vpow.pop %v176
    %v178 = vmul.f32 %v160, %v175
    %v179 = vmul.f32 %v161, %v177
    %v180 = vmul.f32 %v178, %v152
    %v181 = vmul.f32 %v179, %v153
    %v182 = vld [vmem:[#allocation6] sm:$0xff]
    %v183 = vld [vmem:[#allocation6 + $0x8] sm:$0xff]
    %v184 = vmul.f32 %v182, %v180
    %v185 = vmul.f32 %v183, %v181
    %v186 = vld [vmem:[#allocation13] sm:$0xff]
    %v187 = vld [vmem:[#allocation13 + $0x8] sm:$0xff]
    %v188 = vmul.f32 %v184, %v186
    %v189 = vmul.f32 %v185, %v187
    %v190 = vsel %vm156, %v188, 0.0
    %v191 = vsel %vm157, %v189, 0.0
    %192 = vst [vmem:[#allocation16] sm:$0xff] %v190
    %193 = vst [vmem:[#allocation16 + $0x8] sm:$0xff] %v191
    %v194 = vld [vmem:[#allocation15] sm:$0xff]
    %v195 = vld [vmem:[#allocation15 + $0x8] sm:$0xff]
    %v196 = vlaneseq
    %v197 = vand.u32 %v196, 127
    %v198 = vlaneseq
    %v199 = vshrl.u32 %v198, 7
    %vm200 = vcmp.eq.s32.totalorder %v194, 0
    %vm201 = vcmp.eq.s32.totalorder %v195, 0
    %v202 = vsel %vm200, %v190, 0.0
    %v203 = vsel %vm201, %v191, 0.0
    %v204 = vadd.f32 %v202, %v203
    %205 = vadd.xlane.f32.xlu0 %v204
    %v206 = vpop.xlane.xlu0 %205
    %v207 = vrot.slane %v206, 4
    %v208 = vadd.f32 %v206, %v207
    %v209 = vrot.slane %v208, 2
    %v210 = vadd.f32 %v208, %v209
    %v211 = vrot.slane %v210, 1
    %v212 = vadd.f32 %v210, %v211
    %s213 = vtos %v212
    %vm214 = vcmp.eq.s32.totalorder %v197, 0
    %v215 = vstv %s213
    %v216 = vsel %vm214, %v215, 0.0
    %vm217 = vcmp.eq.s32.totalorder %v194, 1
    %vm218 = vcmp.eq.s32.totalorder %v195, 1
    %v219 = vsel %vm217, %v190, 0.0
    %v220 = vsel %vm218, %v191, 0.0
    %v221 = vadd.f32 %v219, %v220
    %222 = vadd.xlane.f32.xlu0 %v221
    %v223 = vpop.xlane.xlu0 %222
    %v224 = vrot.slane %v223, 4
    %v225 = vadd.f32 %v223, %v224
    %v226 = vrot.slane %v225, 2
    %v227 = vadd.f32 %v225, %v226
    %v228 = vrot.slane %v227, 1
    %v229 = vadd.f32 %v227, %v228
    %s230 = vtos %v229
    %vm231 = vcmp.eq.s32.totalorder %v197, 1
    %v232 = vstv %s230
    %v233 = vsel %vm231, %v232, %v216
    %vm234 = vcmp.eq.s32.totalorder %v194, 2
    %vm235 = vcmp.eq.s32.totalorder %v195, 2
    %v236 = vsel %vm234, %v190, 0.0
    %v237 = vsel %vm235, %v191, 0.0
    %v238 = vadd.f32 %v236, %v237
    %239 = vadd.xlane.f32.xlu0 %v238
    %v240 = vpop.xlane.xlu0 %239
    %v241 = vrot.slane %v240, 4
    %v242 = vadd.f32 %v240, %v241
    %v243 = vrot.slane %v242, 2
    %v244 = vadd.f32 %v242, %v243
    %v245 = vrot.slane %v244, 1
    %v246 = vadd.f32 %v244, %v245
    %s247 = vtos %v246
    %vm248 = vcmp.eq.s32.totalorder %v197, 2
    %v249 = vstv %s247
    %v250 = vsel %vm248, %v249, %v233
    %vm251 = vcmp.eq.s32.totalorder %v194, 3
    %vm252 = vcmp.eq.s32.totalorder %v195, 3
    %v253 = vsel %vm251, %v190, 0.0
    %v254 = vsel %vm252, %v191, 0.0
    %v255 = vadd.f32 %v253, %v254
    %256 = vadd.xlane.f32.xlu0 %v255
    %v257 = vpop.xlane.xlu0 %256
    %v258 = vrot.slane %v257, 4
    %v259 = vadd.f32 %v257, %v258
    %v260 = vrot.slane %v259, 2
    %v261 = vadd.f32 %v259, %v260
    %v262 = vrot.slane %v261, 1
    %v263 = vadd.f32 %v261, %v262
    %s264 = vtos %v263
    %vm265 = vcmp.eq.s32.totalorder %v197, 3
    %v266 = vstv %s264
    %v267 = vsel %vm265, %v266, %v250
    %vm268 = vcmp.eq.s32.totalorder %v194, 4
    %vm269 = vcmp.eq.s32.totalorder %v195, 4
    %v270 = vsel %vm268, %v190, 0.0
    %v271 = vsel %vm269, %v191, 0.0
    %v272 = vadd.f32 %v270, %v271
    %273 = vadd.xlane.f32.xlu0 %v272
    %v274 = vpop.xlane.xlu0 %273
    %v275 = vrot.slane %v274, 4
    %v276 = vadd.f32 %v274, %v275
    %v277 = vrot.slane %v276, 2
    %v278 = vadd.f32 %v276, %v277
    %v279 = vrot.slane %v278, 1
    %v280 = vadd.f32 %v278, %v279
    %s281 = vtos %v280
    %vm282 = vcmp.eq.s32.totalorder %v197, 4
    %v283 = vstv %s281
    %v284 = vsel %vm282, %v283, %v267
    %vm285 = vcmp.eq.s32.totalorder %v194, 5
    %vm286 = vcmp.eq.s32.totalorder %v195, 5
    %v287 = vsel %vm285, %v190, 0.0
    %v288 = vsel %vm286, %v191, 0.0
    %v289 = vadd.f32 %v287, %v288
    %290 = vadd.xlane.f32.xlu0 %v289
    %v291 = vpop.xlane.xlu0 %290
    %v292 = vrot.slane %v291, 4
    %v293 = vadd.f32 %v291, %v292
    %v294 = vrot.slane %v293, 2
    %v295 = vadd.f32 %v293, %v294
    %v296 = vrot.slane %v295, 1
    %v297 = vadd.f32 %v295, %v296
    %s298 = vtos %v297
    %vm299 = vcmp.eq.s32.totalorder %v197, 5
    %v300 = vstv %s298
    %v301 = vsel %vm299, %v300, %v284
    %vm302 = vcmp.eq.s32.totalorder %v194, 6
    %vm303 = vcmp.eq.s32.totalorder %v195, 6
    %v304 = vsel %vm302, %v190, 0.0
    %v305 = vsel %vm303, %v191, 0.0
    %v306 = vadd.f32 %v304, %v305
    %307 = vadd.xlane.f32.xlu0 %v306
    %v308 = vpop.xlane.xlu0 %307
    %v309 = vrot.slane %v308, 4
    %v310 = vadd.f32 %v308, %v309
    %v311 = vrot.slane %v310, 2
    %v312 = vadd.f32 %v310, %v311
    %v313 = vrot.slane %v312, 1
    %v314 = vadd.f32 %v312, %v313
    %s315 = vtos %v314
    %vm316 = vcmp.eq.s32.totalorder %v197, 6
    %v317 = vstv %s315
    %v318 = vsel %vm316, %v317, %v301
    %vm319 = vcmp.eq.s32.totalorder %v194, 7
    %vm320 = vcmp.eq.s32.totalorder %v195, 7
    %v321 = vsel %vm319, %v190, 0.0
    %v322 = vsel %vm320, %v191, 0.0
    %v323 = vadd.f32 %v321, %v322
    %324 = vadd.xlane.f32.xlu0 %v323
    %v325 = vpop.xlane.xlu0 %324
    %v326 = vrot.slane %v325, 4
    %v327 = vadd.f32 %v325, %v326
    %v328 = vrot.slane %v327, 2
    %v329 = vadd.f32 %v327, %v328
    %v330 = vrot.slane %v329, 1
    %v331 = vadd.f32 %v329, %v330
    %s332 = vtos %v331
    %vm333 = vcmp.eq.s32.totalorder %v197, 7
    %v334 = vstv %s332
    %v335 = vsel %vm333, %v334, %v318
    %vm336 = vcmp.eq.s32.totalorder %v199, 0
    %v337 = vsel %vm336, %v335, 0.0
    %338 = vst [vmem:[#allocation17] sm:$0xff] %v337
    // Predicated region
    $region70: #{tpu_custom_call.1} parent=1 // pred_check
      _
    $region71: #{tpu_custom_call.1} parent=1 // pred_check_branch
      %340 = sbr.rel (0) target = $region73
    $region72: #{tpu_custom_call.1} parent=1 // pred_region
      %s342 = ssub.s32 256, 256
      %343 = vsyncadd [#allocation4], %s342
      %s344 = sshll.u32 [#allocation16], 4
      %s345 = int_to_ptr.vmem [resolvable:$true] %s344
      %350 = dma.vmem_to_hbm [thread:$0]  %s345, 256, %s9, [#allocation4], 128, 128, 8
    $region73: #{tpu_custom_call.1} parent=1 // pred_fallthru
      _
    // Predicated region
    $region74: #{tpu_custom_call.1} parent=1 // pred_check
      _
    $region75: #{tpu_custom_call.1} parent=1 // pred_check_branch
      %352 = sbr.rel (0) target = $region77
    $region76: #{tpu_custom_call.1} parent=1 // pred_region
      %s354 = ssub.s32 128, 128
      %355 = vsyncadd [#allocation18], %s354
      %s357 = sshll.u32 [#allocation17], 4
      %s358 = int_to_ptr.vmem [resolvable:$true] %s357
      %360 = dma.vmem_to_hbm [thread:$0]  %s358, 128, %s10, [#allocation18]
    $region77: #{tpu_custom_call.1} parent=1 // pred_fallthru
      _
    // Predicated region
    $region78: #{tpu_custom_call.1} parent=1 // pred_check
      _
    $region79: #{tpu_custom_call.1} parent=1 // pred_check_branch
      %362 = sbr.rel (0) target = $region81
    $region80: #{tpu_custom_call.1} parent=1 // pred_region
      %363 = dma.done [#allocation4], 256
    $region81: #{tpu_custom_call.1} parent=1 // pred_fallthru
      _
    // Predicated region
    $region82: #{tpu_custom_call.1} parent=1 // pred_check
      _
    $region83: #{tpu_custom_call.1} parent=1 // pred_check_branch
      %365 = sbr.rel (0) target = $region85
    $region84: #{tpu_custom_call.1} parent=1 // pred_region
      %366 = dma.done [#allocation18], 128
    $region85: #{tpu_custom_call.1} parent=1 // pred_fallthru
      _
    %367 = vsyncpa [#allocation3], 1
    %368 = vsyncpa [#allocation8], 1
    %369 = vsyncpa [#allocation11], 1
    %370 = vsyncpa [#allocation14], 1
    %371 = vsyncpa [#allocation4], 1
    %372 = vsyncpa [#allocation18], 1
    %373 = vsyncpa [#allocation5], 1

</llo_original>
